<compile_context>
chip_gen: v7x
topology: tpu7x:2x2x1
jax: 0.10.0
libtpu: 0.0.40
codegen_flags: <defaults>
</compile_context>

<pallas_src>
import math

import jax
import jax.numpy as jnp
from jax.experimental import pallas as pl
from jax.experimental.pallas import tpu as pltpu

_VMEM_LIMIT = 64 * 1024 * 1024   # safe on v5e/v6e (128 MiB phys) and v7x (64 MiB phys)


def _pick_tile(n, cap, mult):
    """Largest tile <= cap that divides n and is a multiple of `mult`; else full n."""
    if n <= cap:
        return n
    t = (cap // mult) * mult
    while t >= mult:
        if n % t == 0:
            return t
        t -= mult
    return n


# ---------------------------------------------------------------------------
# Row/column-tiled linear:  y[i,j] = x[i,:] @ W[:,j] + b[j]
# ---------------------------------------------------------------------------

def _linear_kernel(x_ref, w_ref, b_ref, o_ref):
    x = x_ref[...].astype(jnp.bfloat16)
    w = w_ref[...].astype(jnp.bfloat16)
    acc = jnp.dot(x, w, preferred_element_type=jnp.float32)
    o_ref[...] = (acc + b_ref[...]).astype(o_ref.dtype)


def pallas_linear(x2d, w, b, out_dtype):
    """x2d: (rows, D_in); w: (D_in, D_out) bf16; b: (D_out,) f32."""
    rows, d_in = x2d.shape
    d_out = w.shape[1]
    tm = _pick_tile(rows, 256, 8)
    tn = _pick_tile(d_out, 512, 128)
    grid = (pl.cdiv(rows, tm), pl.cdiv(d_out, tn))
    cost = pl.CostEstimate(
        flops=2 * rows * d_in * d_out,
        transcendentals=0,
        bytes_accessed=int(rows * d_in * x2d.dtype.itemsize
                           + d_in * d_out * w.dtype.itemsize
                           + rows * d_out * jnp.dtype(out_dtype).itemsize),
    )
    return pl.pallas_call(
        _linear_kernel,
        out_shape=jax.ShapeDtypeStruct((rows, d_out), out_dtype),
        grid_spec=pltpu.PrefetchScalarGridSpec(
            num_scalar_prefetch=0,
            grid=grid,
            in_specs=[
                pl.BlockSpec((tm, d_in), lambda i, j: (i, 0)),
                pl.BlockSpec((d_in, tn), lambda i, j: (0, j)),   # N-tiled weight
                pl.BlockSpec((1, tn), lambda i, j: (0, j)),
            ],
            out_specs=pl.BlockSpec((tm, tn), lambda i, j: (i, j)),
        ),
        compiler_params=pltpu.CompilerParams(
            dimension_semantics=("parallel", "parallel"),
            vmem_limit_bytes=_VMEM_LIMIT),
        cost_estimate=cost,
    )(x2d, w, b.reshape(1, d_out))


# ---------------------------------------------------------------------------
# Flash attention: grid = (B*H, q_tiles, kv_tiles), online softmax in VMEM
# ---------------------------------------------------------------------------

def _flash_step(q_ref, k_ref, v_ref, m_ref, o_ref, m_scr, l_scr, acc_scr):
    ki = pl.program_id(2)

    @pl.when(ki == 0)
    def _():
        m_scr[...] = jnp.full_like(m_scr, -jnp.inf)
        l_scr[...] = jnp.zeros_like(l_scr)
        acc_scr[...] = jnp.zeros_like(acc_scr)

    # 1/sqrt(dk) is already folded into the Q projection weights.
    s = jax.lax.dot_general(
        q_ref[...], k_ref[...], (((1,), (1,)), ((), ())),
        preferred_element_type=jnp.float32)                    # (tq, tk) f32
    if m_ref is not None:
        s = jnp.where(m_ref[...] == 0, -1e9, s)                # once per tile, all heads share

    m_prev = m_scr[...]
    m_new = jnp.maximum(m_prev, jnp.max(s, axis=-1, keepdims=True))
    alpha = jnp.exp(m_prev - m_new)
    p = jnp.exp(s - m_new)
    l_scr[...] = alpha * l_scr[...] + jnp.sum(p, axis=-1, keepdims=True)
    acc_scr[...] = alpha * acc_scr[...] + jnp.dot(
        p.astype(jnp.bfloat16), v_ref[...], preferred_element_type=jnp.float32)
    m_scr[...] = m_new

    @pl.when(ki == pl.num_programs(2) - 1)
    def _():
        o_ref[...] = (acc_scr[...] *
                      pl.reciprocal(l_scr[...], approx=True)).astype(o_ref.dtype)


def _make_flash_kernel(masked):
    if masked:
        def kernel(q_ref, k_ref, v_ref, m_ref, o_ref, m_scr, l_scr, acc_scr):
            _flash_step(q_ref, k_ref, v_ref, m_ref, o_ref, m_scr, l_scr, acc_scr)
    else:
        def kernel(q_ref, k_ref, v_ref, o_ref, m_scr, l_scr, acc_scr):
            _flash_step(q_ref, k_ref, v_ref, None, o_ref, m_scr, l_scr, acc_scr)
    return kernel


def pallas_flash_attention(qh, kh, vh, num_heads, mask=None, tq_cap=256, tk_cap=512):
    """qh/kh/vh: (B*H, S, dk) bf16. mask: (Bm, S, S) bf16 with Bm in {1, B} or None."""
    BH, S, dk = qh.shape
    tq = _pick_tile(S, tq_cap, 8)
    tk = _pick_tile(S, tk_cap, 128)
    grid = (BH, pl.cdiv(S, tq), pl.cdiv(S, tk))

    q_spec = pl.BlockSpec((None, tq, dk), lambda b, qi, ki: (b, qi, 0))
    kv_spec = pl.BlockSpec((None, tk, dk), lambda b, qi, ki: (b, ki, 0))
    in_specs = [q_spec, kv_spec, kv_spec]
    args = [qh, kh, vh]

    if mask is not None:
        bm = mask.shape[0]
        if bm == 1:
            m_map = lambda b, qi, ki: (0, qi, ki)                 # resident, no broadcast
        else:
            m_map = lambda b, qi, ki: (b // num_heads, qi, ki)    # per-batch mask
        in_specs.append(pl.BlockSpec((None, tq, tk), m_map))
        args.append(mask)

    out_spec = pl.BlockSpec((None, tq, dk), lambda b, qi, ki: (b, qi, 0))
    cost = pl.CostEstimate(
        flops=4 * BH * S * S * dk,
        transcendentals=BH * S * S,
        bytes_accessed=int(4 * BH * S * dk * 2
                           + (mask.size * 2 if mask is not None else 0)),
    )
    return pl.pallas_call(
        _make_flash_kernel(mask is not None),
        out_shape=jax.ShapeDtypeStruct((BH, S, dk), jnp.bfloat16),
        grid_spec=pltpu.PrefetchScalarGridSpec(
            num_scalar_prefetch=0,
            grid=grid,
            in_specs=in_specs,
            out_specs=out_spec,
            scratch_shapes=[pltpu.VMEM((tq, 1), jnp.float32),   # running max
                            pltpu.VMEM((tq, 1), jnp.float32),   # running sum
                            pltpu.VMEM((tq, dk), jnp.float32)], # output accumulator
        ),
        compiler_params=pltpu.CompilerParams(
            dimension_semantics=("parallel", "parallel", "arbitrary"),
            vmem_limit_bytes=_VMEM_LIMIT),
        cost_estimate=cost,
    )(*args)


# ---------------------------------------------------------------------------
# Module wrapper
# ---------------------------------------------------------------------------

class MultiHeadedAttentionPallas:
    """Deterministically-initialized port of the PyTorch MultiHeadedAttention."""

    def __init__(self, model_dim, head, key, dropout=0.1):
        assert model_dim % head == 0
        self.model_dim = model_dim
        self.head = head
        self.dk = model_dim // head
        del dropout  # identity at inference

        keys = jax.random.split(key, 8)
        bound = 1.0 / math.sqrt(model_dim)   # PyTorch nn.Linear default init range
        ws, bs = [], []
        for i in range(4):
            w = jax.random.uniform(keys[2 * i], (model_dim, model_dim),
                                   minval=-bound, maxval=bound, dtype=jnp.float32)
            b = jax.random.uniform(keys[2 * i + 1], (model_dim,),
                                   minval=-bound, maxval=bound, dtype=jnp.float32)
            ws.append(w)
            bs.append(b)
        self.weights_f32 = ws          # (D_in, D_out) = PyTorch W.T, for the reference
        self.biases_f32 = bs

        # Fold 1/sqrt(dk) into the Q projection:  ((x Wq + bq)/sqrt(dk)) k^T == scores/sqrt(dk)
        scale = 1.0 / math.sqrt(self.dk)
        self.w_bf16 = [(ws[0] * scale).astype(jnp.bfloat16),
                       ws[1].astype(jnp.bfloat16),
                       ws[2].astype(jnp.bfloat16),
                       ws[3].astype(jnp.bfloat16)]
        self.b_kernel = [bs[0] * scale, bs[1], bs[2], bs[3]]
        self.w_qkv = jnp.concatenate(self.w_bf16[:3], axis=1)     # (D, 3D)
        self.b_qkv = jnp.concatenate(self.b_kernel[:3], axis=0)   # (3D,)

    def __call__(self, q, k, v, mask=None, self_attention=None):
        B, S, D = q.shape
        H, dk = self.head, self.dk
        if self_attention is None:
            # Identity check works eagerly; under jit with distinct traced args pass
            # self_attention=True explicitly to keep the fused-QKV path.
            self_attention = (q is k) and (k is v)

        if self_attention:
            y = pallas_linear(q.reshape(B * S, D), self.w_qkv, self.b_qkv, jnp.bfloat16)
            qp, kp, vp = y[:, :D], y[:, D:2 * D], y[:, 2 * D:]
        else:
            qp = pallas_linear(q.reshape(B * S, D), self.w_bf16[0], self.b_kernel[0], jnp.bfloat16)
            kp = pallas_linear(k.reshape(B * S, D), self.w_bf16[1], self.b_kernel[1], jnp.bfloat16)
            vp = pallas_linear(v.reshape(B * S, D), self.w_bf16[2], self.b_kernel[2], jnp.bfloat16)

        def split_heads(x):   # (B*S, D) -> (B*H, S, dk): heads become a grid axis
            return x.reshape(B, S, H, dk).transpose(0, 2, 1, 3).reshape(B * H, S, dk)

        qh, kh, vh = split_heads(qp), split_heads(kp), split_heads(vp)

        m_bf16 = None
        if mask is not None:
            m = jnp.asarray(mask)
            if m.ndim == 4:                     # (B or 1, 1, S, S)
                m = m[:, 0]
            if m.ndim == 2:                     # (S, S)
                m = m[None]
            # keep (Bm, S, S) — never broadcast to (B, S, S) in HBM
            m_bf16 = (m != 0).astype(jnp.bfloat16)

        ctx = pallas_flash_attention(qh, kh, vh, H, mask=m_bf16)   # (B*H, S, dk)
        ctx = ctx.reshape(B, H, S, dk).transpose(0, 2, 1, 3).reshape(B * S, D)
        out = pallas_linear(ctx, self.w_bf16[3], self.b_kernel[3], jnp.float32)
        return out.reshape(B, S, D)


# ---------------------------------------------------------------------------
# Plain-JAX f32 reference (ground-truth semantics of the PyTorch module)
# ---------------------------------------------------------------------------

def reference_mha(mha, q, k, v, mask=None):
    B, S, D = q.shape
    H, dk = mha.head, mha.dk
    W, Bs = mha.weights_f32, mha.biases_f32

    def proj(x, w, b):
        y = x.reshape(B * S, D) @ w + b
        return y.reshape(B, S, H, dk).transpose(0, 2, 1, 3)

    qh = proj(q, W[0], Bs[0])
    kh = proj(k, W[1], Bs[1])
    vh = proj(v, W[2], Bs[2])
    scores = jnp.einsum("bhqd,bhkd->bhqk", qh, kh) / math.sqrt(dk)
    if mask is not None:
        m = jnp.asarray(mask).astype(jnp.float32)
        if m.ndim == 2:
            m = m[None, None]
        elif m.ndim == 3:
            m = m[:, None]                       # (B, 1, S, S)
        scores = jnp.where(m == 0.0, -1e9, scores)
    attn = jax.nn.softmax(scores, axis=-1)
    ctx = jnp.einsum("bhqk,bhkd->bhqd", attn, vh)
    ctx = ctx.transpose(0, 2, 1, 3).reshape(B * S, H * dk)
    return (ctx @ W[3] + Bs[3]).reshape(B, S, D)


if __name__ == "__main__":
    B, S, model_dim, head = 2, 8, 32, 4

    key = jax.random.PRNGKey(0)
    kx, kk, kv, kparams = jax.random.split(key, 4)
    x = jax.random.normal(kx, (B, S, model_dim), dtype=jnp.float32)

    mha = MultiHeadedAttentionPallas(model_dim, head, kparams)

    # Test 1: self-attention (fused QKV path), no mask.
    out = jax.block_until_ready(mha(x, x, x))
    ref = reference_mha(mha, x, x, x)
    assert out.shape == (B, S, model_dim)
    # bf16 MXU operands + approx reciprocal vs f32 reference -> loose tolerance
    assert jnp.allclose(out, ref, atol=3e-2, rtol=3e-2), "self-attn mismatch"

    # Test 2: distinct q/k/v (general projection path) with a shared causal mask (Bm=1).
    q_in = x
    k_in = jax.random.normal(kk, (B, S, model_dim), dtype=jnp.float32)
    v_in = jax.random.normal(kv, (B, S, model_dim), dtype=jnp.float32)
    causal = jnp.tril(jnp.ones((S, S), jnp.float32))[None]   # (1, S, S)
    out_m = jax.block_until_ready(mha(q_in, k_in, v_in, mask=causal))
    ref_m = reference_mha(mha, q_in, k_in, v_in, mask=causal)
    assert jnp.allclose(out_m, ref_m, atol=3e-2, rtol=3e-2), "causal-mask mismatch"

    # Test 3: self-attention with a per-batch key-padding mask (Bm=B path).
    lens = jnp.array([5, 8])
    key_valid = (jnp.arange(S)[None, :] < lens[:, None]).astype(jnp.float32)   # (B, S)
    pad_mask = jnp.broadcast_to(key_valid[:, None, :], (B, S, S))              # (B, S, S)
    out_p = jax.block_until_ready(mha(x, x, x, mask=pad_mask))
    ref_p = reference_mha(mha, x, x, x, mask=pad_mask)
    assert jnp.allclose(out_p, ref_p, atol=3e-2, rtol=3e-2), "padding-mask mismatch"

    print("KERNEL_OK")
</pallas_src>

<mosaic_0001>
module attributes {stable_mosaic.version = 11 : i64} {
  func.func @_linear_kernel(%arg0: i32, %arg1: i32, %arg2: memref<16x32xf32, #tpu.memory_space<vmem>>, %arg3: memref<32x96xbf16, #tpu.memory_space<vmem>>, %arg4: memref<1x96xf32, #tpu.memory_space<vmem>>, %arg5: memref<16x96xbf16, #tpu.memory_space<vmem>>) attributes {dimension_semantics = [#tpu.dimension_semantics<parallel>, #tpu.dimension_semantics<parallel>], iteration_bounds = array<i64: 1, 1>, scalar_prefetch = 0 : i64, scratch_operands = 0 : i64, tpu.core_type = #tpu.core_type<tc>, window_params = [{transform_indices = @transform_0, window_bounds = array<i64: 16, 32>}, {transform_indices = @transform_1, window_bounds = array<i64: 32, 96>}, {transform_indices = @transform_2, window_bounds = array<i64: 1, 96>}, {transform_indices = @transform_3, window_bounds = array<i64: 16, 96>}]} {
    %c0 = arith.constant 0 : index
    %c0_0 = arith.constant 0 : index
    %0 = vector.load %arg2[%c0, %c0_0] : memref<16x32xf32, #tpu.memory_space<vmem>>, vector<16x32xf32>
    %1 = arith.truncf %0 : vector<16x32xf32> to vector<16x32xbf16>
    %c0_1 = arith.constant 0 : index
    %c0_2 = arith.constant 0 : index
    %2 = vector.load %arg3[%c0_1, %c0_2] : memref<32x96xbf16, #tpu.memory_space<vmem>>, vector<32x96xbf16>
    %cst = arith.constant dense<0.000000e+00> : vector<16x96xf32>
    %3 = tpu.matmul %1, %2, %cst {dimension_numbers = #tpu.dot_dimension_numbers<[1], [0], [0], [1], [0, 0, 1, 1], [], []>} : vector<16x32xbf16>, vector<32x96xbf16>, vector<16x96xf32> -> vector<16x96xf32>
    %c0_3 = arith.constant 0 : index
    %c0_4 = arith.constant 0 : index
    %4 = vector.load %arg4[%c0_3, %c0_4] : memref<1x96xf32, #tpu.memory_space<vmem>>, vector<1x96xf32>
    %5 = vector.broadcast %4 : vector<1x96xf32> to vector<16x96xf32>
    %6 = arith.addf %3, %5 : vector<16x96xf32>
    %7 = arith.truncf %6 : vector<16x96xf32> to vector<16x96xbf16>
    %c0_5 = arith.constant 0 : index
    %c0_6 = arith.constant 0 : index
    %8 = vector.load %arg5[%c0_5, %c0_6] : memref<16x96xbf16, #tpu.memory_space<vmem>>, vector<16x96xbf16>
    tpu.vector_store %arg5[%c0_5, %c0_6], %7 {strides = array<i32>} : memref<16x96xbf16, #tpu.memory_space<vmem>>, vector<16x96xbf16>,
    return
  }
  func.func @transform_0(%arg0: i32, %arg1: i32) -> (i32, i32) {
    %c0_i32 = arith.constant 0 : i32
    %c0_i32_0 = arith.constant 0 : i32
    return %arg0, %c0_i32 : i32, i32
  }
  func.func @transform_1(%arg0: i32, %arg1: i32) -> (i32, i32) {
    %c0_i32 = arith.constant 0 : i32
    %c0_i32_0 = arith.constant 0 : i32
    return %c0_i32, %arg1 : i32, i32
  }
  func.func @transform_2(%arg0: i32, %arg1: i32) -> (i32, i32) {
    %c0_i32 = arith.constant 0 : i32
    %c0_i32_0 = arith.constant 0 : i32
    return %c0_i32, %arg1 : i32, i32
  }
  func.func @transform_3(%arg0: i32, %arg1: i32) -> (i32, i32) {
    %c0_i32 = arith.constant 0 : i32
    return %arg0, %arg1 : i32, i32
  }
}

</mosaic_0001>

<llo_original>
// kernel: tpu_custom_call.1
$region0: #{tpu_custom_call.1}
  #allocation0 [shape = 'u32[]', space=smem, size = 0x4, offset = 0x4, fixed_abs, tag = 'smem constant byte address 0x4 - core index']
  #allocation1 [shape = 'u32[144,128]{1,0:T(1,128)}', space=vmem, size = 0x12000, scoped, tag = 'internal scratch']
  %s0 = inlined_call_operand.hbm [shape: f32[16,32], index: 0, kind: input, shape index: {}]
  %s1 = inlined_call_operand.hbm [shape: bf16[32,96], index: 1, kind: input, shape index: {}]
  %s2 = inlined_call_operand.hbm [shape: f32[1,96], index: 2, kind: input, shape index: {}]
  %s3 = inlined_call_operand.hbm [shape: bf16[16,96], index: 3, kind: output, shape index: {}]
  %s4 = sld [smem:[#allocation0]]
  $region34: #{tpu_custom_call.1} parent=0
    _
  %s6 = ssub.s32 1, %s4
  %s7 = scalar_select 0, %s6, %s4
  $region1: #{tpu_custom_call.1} parent=0
    #allocation2 [shape = 'u8[8192]{0}', space=vmem, size = 0x2000, scoped, tag = 'input window, operand 0, single buffered']
    #allocation3 [shape = 's32[1]{0}', space=sflag, size = 0x4, scoped, tag = 'scoped memory for tpu_custom_call.1']
    #allocation4 [shape = 's32[1]{0}', space=sflag, size = 0x4, scoped, tag = 'scoped memory for tpu_custom_call.1']
    #allocation5 [shape = 'u8[8192]{0}', space=vmem, size = 0x2000, scoped, tag = 'input window, operand 1, single buffered']
    #allocation6 [shape = 's32[1]{0}', space=sflag, size = 0x4, scoped, tag = 'scoped memory for tpu_custom_call.1']
    #allocation7 [shape = 'u8[512]{0}', space=vmem, size = 0x400, scoped, tag = 'input window, operand 2, single buffered']
    #allocation8 [shape = 'u8[4096]{0}', space=vmem, size = 0x1000, scoped, tag = 'output window, operand 0, single buffered']
    %8 = vsyncpa [#allocation3], 0
    %9 = vsyncpa [#allocation6], 0
    %10 = vsyncpa [#allocation4], 0
    // Predicated region
    $region2: #{tpu_custom_call.1} parent=1 // pred_check
      _
    $region3: #{tpu_custom_call.1} parent=1 // pred_check_branch
      %12 = sbr.rel (0) target = $region5
    $region4: #{tpu_custom_call.1} parent=1 // pred_region
      %s14 = ssub.s32 256, 256
      %15 = vsyncadd [#allocation3], %s14
      %s16 = sshll.u32 [#allocation2], 4
      %s17 = int_to_ptr.vmem [resolvable:$true] %s16
      %22 = dma.hbm_to_vmem [thread:$0]  %s0, 256, %s17, [#allocation3], 128, 128, 8
    $region5: #{tpu_custom_call.1} parent=1 // pred_fallthru
      _
    // Predicated region
    $region6: #{tpu_custom_call.1} parent=1 // pred_check
      _
    $region7: #{tpu_custom_call.1} parent=1 // pred_check_branch
      %24 = sbr.rel (0) target = $region9
    $region8: #{tpu_custom_call.1} parent=1 // pred_region
      %s26 = ssub.s32 256, 256
      %27 = vsyncadd [#allocation6], %s26
      %s28 = sshll.u32 [#allocation5], 4
      %s29 = int_to_ptr.vmem [resolvable:$true] %s28
      %34 = dma.hbm_to_vmem [thread:$0]  %s1, 256, %s29, [#allocation6], 64, 64, 4
    $region9: #{tpu_custom_call.1} parent=1 // pred_fallthru
      _
    // Predicated region
    $region10: #{tpu_custom_call.1} parent=1 // pred_check
      _
    $region11: #{tpu_custom_call.1} parent=1 // pred_check_branch
      %36 = sbr.rel (0) target = $region13
    $region12: #{tpu_custom_call.1} parent=1 // pred_region
      %s38 = ssub.s32 16, 16
      %39 = vsyncadd [#allocation6], %s38
      %s41 = sshll.u32 [#allocation7], 4
      %s42 = int_to_ptr.vmem [resolvable:$true] %s41
      %44 = dma.hbm_to_vmem [thread:$0]  %s2, 16, %s42, [#allocation6]
    $region13: #{tpu_custom_call.1} parent=1 // pred_fallthru
      _
    // Predicated region
    $region14: #{tpu_custom_call.1} parent=1 // pred_check
      _
    $region15: #{tpu_custom_call.1} parent=1 // pred_check_branch
      %46 = sbr.rel (0) target = $region17
    $region16: #{tpu_custom_call.1} parent=1 // pred_region
      %47 = dma.done [#allocation3], 256
    $region17: #{tpu_custom_call.1} parent=1 // pred_fallthru
      _
    // Predicated region
    $region18: #{tpu_custom_call.1} parent=1 // pred_check
      _
    $region19: #{tpu_custom_call.1} parent=1 // pred_check_branch
      %49 = sbr.rel (0) target = $region21
    $region20: #{tpu_custom_call.1} parent=1 // pred_region
      %50 = dma.done [#allocation6], 256
    $region21: #{tpu_custom_call.1} parent=1 // pred_fallthru
      _
    // Predicated region
    $region22: #{tpu_custom_call.1} parent=1 // pred_check
      _
    $region23: #{tpu_custom_call.1} parent=1 // pred_check_branch
      %52 = sbr.rel (0) target = $region25
    $region24: #{tpu_custom_call.1} parent=1 // pred_region
      %53 = dma.done [#allocation6], 16
    $region25: #{tpu_custom_call.1} parent=1 // pred_fallthru
      _
    %v55 = vld [vmem:[#allocation2] sm:$0xff]
    %v56 = vld [vmem:[#allocation2 + $0x8] sm:$0xff]
    %v57 = vpack.c.bf16 %v56, %v55
    %v58 = vld [vmem:[#allocation5] sm:$0xf]
    %v59 = vld [vmem:[#allocation5 + $0x4] sm:$0xf]
    %v60 = vld [vmem:[#allocation5 + $0x8] sm:$0xf]
    %v61 = vld [vmem:[#allocation5 + $0xc] sm:$0xf]
    %v62 = vld [vmem:[#allocation7] sm:$0x1]
    %v64 = vlaneseq
    %v65 = vshrl.u32 %v64, 7
    %v66 = vsub.s32 0, %v65
    %v67 = vrot.slane %v62, %v66
    %v73 = vunpack.c.l.b16 %v58
    %v74 = vunpack.c.l.b16 %v59
    %v75 = vunpack.c.l.b16 %v60
    %v76 = vunpack.c.l.b16 %v61
    %v77 = vpack.c.b16 %v74, %v73
    %v78 = vpack.c.b16 %v76, %v75
    %vm81 = vcmask 261120
    %v83 = vsel %vm81, %v57, 0
    %85 = vmatprep.subr.bf16.mxu0 0
    %86 = vmatpush1.bf16.msra.mxu0 %v77
    %87 = vmatprep.subr.bf16.mxu0 0
    %88 = vmatpush1.bf16.msra.mxu0 %v78
    %89 = vmatprep.subr.bf16.mxu0 0
    %90 = vmatpush1.bf16.msra.mxu0 0
    %91 = vmatprep.subr.bf16.mxu0 0
    %92 = vmatpush1.bf16.msra.mxu0 0
    %93 = vmatprep.subr.bf16.mxu0 0
    %94 = vmatpush1.bf16.msra.mxu0 0
    %95 = vmatprep.subr.bf16.mxu0 0
    %96 = vmatpush1.bf16.msra.mxu0 0
    %97 = vmatprep.subr.bf16.mxu0 0
    %98 = vmatpush1.bf16.msra.mxu0 0
    %99 = vmatprep.subr.bf16.mxu0 0
    %100 = vmatpush1.bf16.msra.mxu0 0
    %101 = vmatprep.subr.bf16.mxu0 0
    %102 = vmatpush1.bf16.msra.mxu0 0
    %103 = vmatprep.subr.bf16.mxu0 0
    %104 = vmatpush1.bf16.msra.mxu0 0
    %105 = vmatprep.subr.bf16.mxu0 0
    %106 = vmatpush1.bf16.msra.mxu0 0
    %107 = vmatprep.subr.bf16.mxu0 0
    %108 = vmatpush1.bf16.msra.mxu0 0
    %109 = vmatprep.subr.bf16.mxu0 0
    %110 = vmatpush1.bf16.msra.mxu0 0
    %111 = vmatprep.subr.bf16.mxu0 0
    %112 = vmatpush1.bf16.msra.mxu0 0
    %113 = vmatprep.subr.bf16.mxu0 0
    %114 = vmatpush1.bf16.msra.mxu0 0
    %115 = vmatprep.subr.bf16.mxu0 0
    %116 = vmatpush1.bf16.msra.mxu0 0
    %117 = vmatprep.mubr.bf16.mxu0 0
    %118 = vmatmul.mubr.bf16.gmra.mrb[0].mxu0 %v83
    %v119 = vpop.f32.mrb[0].mxu0
    %v120 = vadd.f32 %v67, %v119
    %v121 = vpop.f32.mrb[0].mxu0
    %v122 = vpop.f32.mrb[0].mxu0
    %v123 = vadd.f32 %v67, %v122
    %v124 = vpop.f32.mrb[0].mxu0
    %125 = vdwg.mxu0
    %v126 = vpack.c.bf16 %v123, %v120
    %v128 = vunpack.c.l.b16 %v126
    %v129 = vunpack.c.h.b16 %v126
    %v130 = vpack.c.b16 %v128, %v128
    %v131 = vpack.c.b16 %v129, %v129
    %vm134 = vcmask 781312
    %135 = vst.msk [vmem:[#allocation8] sm:$0xf] %vm134, %v130
    %136 = vst.msk [vmem:[#allocation8 + $0x4] sm:$0xf] %vm134, %v131
    // Predicated region
    $region26: #{tpu_custom_call.1} parent=1 // pred_check
      _
    $region27: #{tpu_custom_call.1} parent=1 // pred_check_branch
      %138 = sbr.rel (0) target = $region29
    $region28: #{tpu_custom_call.1} parent=1 // pred_region
      %s140 = ssub.s32 128, 128
      %141 = vsyncadd [#allocation4], %s140
      %s142 = sshll.u32 [#allocation8], 4
      %s143 = int_to_ptr.vmem [resolvable:$true] %s142
      %148 = dma.vmem_to_hbm [thread:$0]  %s143, 128, %s3, [#allocation4], 64, 64, 4
    $region29: #{tpu_custom_call.1} parent=1 // pred_fallthru
      _
    // Predicated region
    $region30: #{tpu_custom_call.1} parent=1 // pred_check
      _
    $region31: #{tpu_custom_call.1} parent=1 // pred_check_branch
      %150 = sbr.rel (0) target = $region33
    $region32: #{tpu_custom_call.1} parent=1 // pred_region
      %151 = dma.done [#allocation4], 128
    $region33: #{tpu_custom_call.1} parent=1 // pred_fallthru
      _
    %152 = vsyncpa [#allocation3], 1
    %153 = vsyncpa [#allocation6], 1
    %154 = vsyncpa [#allocation4], 1

</llo_original>
